<compile_context>
chip_gen: v7x
topology: tpu7x:2x2x1
jax: 0.10.0
libtpu: 0.0.40
codegen_flags: <defaults>
</compile_context>

<pallas_src>
import functools

import jax
import jax.numpy as jnp
from jax.experimental import pallas as pl
from jax.experimental.pallas import tpu as pltpu


def _round_up(x, m):
    return ((x + m - 1) // m) * m


def _choose_tile_n(N):
    """Pick the row-tile size.

    After lane padding to 128, a (TILE_N, C<=128) f32 block occupies
    TILE_N * 128 * 4 bytes in VMEM, so TILE_N=8192 is ~4 MiB per buffer
    (~8 MiB double-buffered) -- comfortably inside the 32 MiB default scoped
    VMEM even on v7x's 64 MiB core.  Large tiles amortize the ~0.35 us
    per-grid-step pipeline overhead; we also aim for >=4 grid steps on large
    N so the "parallel" axis can be split across v7x's two TensorCores.
    """
    CAP = 8192   # per-step overhead amortization / VMEM headroom
    MIN = 512    # avoid needlessly small tiles for mid-size N
    target = _round_up(max(1, (N + 3) // 4), 16)   # ~4 grid steps
    tile = min(CAP, max(MIN, target))
    tile = min(tile, _round_up(N, 16))             # never exceed (rounded) N
    return max(tile, 16)                           # multiple of 16 (bf16-safe)


def _fused_mlp_kernel(x_ref, *refs, num_layers):
    """refs = (w0, b0, w1, b1, ..., w_{L-1}, b_{L-1}, o_ref).

    Computes sigmoid(relu(...relu(x @ W0 + b0)...) @ W_{L-1} + b_{L-1}) for the
    current TILE_N-row block, entirely in VMEM.
    """
    o_ref = refs[-1]
    wb_refs = refs[:-1]

    # Single cast straight to the MXU input dtype (no f32 round-trip).
    h_bf16 = x_ref[...].astype(jnp.bfloat16)
    for l in range(num_layers):
        w = wb_refs[2 * l][...]            # (K, M) bf16, resident in VMEM
        b = wb_refs[2 * l + 1][...]        # (1, M) f32
        # bf16 MXU inputs, f32 accumulation; bias add / ReLU / sigmoid in f32.
        acc = jnp.dot(h_bf16, w, preferred_element_type=jnp.float32) + b
        if l < num_layers - 1:
            h_bf16 = jnp.maximum(acc, 0.0).astype(jnp.bfloat16)  # ReLU (VPU)
            # eval-mode dropout: identity
        else:
            o_ref[...] = jax.nn.sigmoid(acc).astype(o_ref.dtype)  # EUP


def init_mlp_decoder_params(key, in_channels, hidden_channels, out_channels,
                            num_layers):
    """Deterministic params. Weights stored transposed: (fan_in, fan_out)."""
    dims = []
    if num_layers == 1:
        dims.append((in_channels, out_channels))
    else:
        dims.append((in_channels, hidden_channels))
        for _ in range(num_layers - 2):
            dims.append((hidden_channels, hidden_channels))
        dims.append((hidden_channels, out_channels))
    params = []
    for fan_in, fan_out in dims:
        key, kw, kb = jax.random.split(key, 3)
        bound = 1.0 / jnp.sqrt(jnp.float32(fan_in))  # torch Linear default init
        w = jax.random.uniform(kw, (fan_in, fan_out), jnp.float32, -bound, bound)
        b = jax.random.uniform(kb, (fan_out,), jnp.float32, -bound, bound)
        params.append((w, b))
    return params


def mlp_decoder_forward(params, x, dropout_p=0.0, training=False):
    """Matches mlp_decoder.forward (eval-mode dropout = identity)."""
    del dropout_p, training  # eval mode: dropout is a no-op
    N, C_in = x.shape
    num_layers = len(params)
    C_out = params[-1][0].shape[1]

    TILE_N = _choose_tile_n(N)
    grid = (pl.cdiv(N, TILE_N),)  # ragged last block handled by Pallas masking

    # x stays in its native dtype (no wrapper copy); cast happens in-kernel.
    in_specs = [pl.BlockSpec((TILE_N, C_in), lambda i: (i, 0))]
    args = [x]
    for (w, b) in params:
        K, M = w.shape
        # Weights/biases: full-array constant blocks, resident across all tiles.
        in_specs.append(pl.BlockSpec((K, M), lambda i: (0, 0)))
        in_specs.append(pl.BlockSpec((1, M), lambda i: (0, 0)))
        args.append(w.astype(jnp.bfloat16))            # bf16 MXU inputs
        args.append(b.reshape(1, M).astype(jnp.float32))

    kernel = functools.partial(_fused_mlp_kernel, num_layers=num_layers)
    out = pl.pallas_call(
        kernel,
        out_shape=jax.ShapeDtypeStruct((N, C_out), jnp.float32),
        grid=grid,
        in_specs=in_specs,
        out_specs=pl.BlockSpec((TILE_N, C_out), lambda i: (i, 0)),
        compiler_params=pltpu.CompilerParams(
            dimension_semantics=("parallel",)),
    )(*args)
    return out


def _reference(params, x):
    h = x.astype(jnp.float32)
    for (w, b) in params[:-1]:
        h = jnp.maximum(h @ w + b, 0.0)
    return jax.nn.sigmoid(h @ params[-1][0] + params[-1][1])


if __name__ == "__main__":
    in_channels = 16
    hidden_channels = 32
    out_channels = 4
    num_layers = 3
    dropout = 0.5

    key = jax.random.PRNGKey(0)
    key, kparam = jax.random.split(key)
    params = init_mlp_decoder_params(
        kparam, in_channels, hidden_channels, out_channels, num_layers)

    # Primary small case (N=8, exercises a single ragged block: TILE_N=16 > N).
    # Secondary case (N=1000) exercises a multi-step grid with a ragged tail.
    for N in (8, 1000):
        key, kx = jax.random.split(key)
        x = jax.random.normal(kx, (N, in_channels), dtype=jnp.float32)

        out = mlp_decoder_forward(params, x, dropout_p=dropout, training=False)
        out = jax.block_until_ready(out)

        assert out.shape == (N, out_channels)
        # sigmoid output must lie in (0, 1)
        assert bool(jnp.all(out > 0.0)) and bool(jnp.all(out < 1.0))

        # cross-check against plain-JAX f32 reference (kernel uses bf16 matmul
        # inputs with f32 accumulation -> loose tolerance).
        ref = _reference(params, x)
        assert bool(jnp.allclose(out, ref, atol=2e-2, rtol=2e-2)), (
            f"mismatch at N={N}")

    print("KERNEL_OK")
</pallas_src>

<mosaic_0001>
module attributes {stable_mosaic.version = 11 : i64} {
  func.func @_fused_mlp_kernel(%arg0: i32, %arg1: memref<16x16xf32, #tpu.memory_space<vmem>>, %arg2: memref<16x32xbf16, #tpu.memory_space<vmem>>, %arg3: memref<1x32xf32, #tpu.memory_space<vmem>>, %arg4: memref<32x32xbf16, #tpu.memory_space<vmem>>, %arg5: memref<1x32xf32, #tpu.memory_space<vmem>>, %arg6: memref<32x4xbf16, #tpu.memory_space<vmem>>, %arg7: memref<1x4xf32, #tpu.memory_space<vmem>>, %arg8: memref<16x4xf32, #tpu.memory_space<vmem>>) attributes {dimension_semantics = [#tpu.dimension_semantics<parallel>], iteration_bounds = array<i64: 1>, scalar_prefetch = 0 : i64, scratch_operands = 0 : i64, tpu.core_type = #tpu.core_type<tc>, window_params = [{transform_indices = @transform_0, window_bounds = array<i64: 16, 16>}, {pipeline_mode = #tpu.pipeline_mode<synchronous>, transform_indices = @transform_1, window_bounds = array<i64: 16, 32>}, {pipeline_mode = #tpu.pipeline_mode<synchronous>, transform_indices = @transform_2, window_bounds = array<i64: 1, 32>}, {pipeline_mode = #tpu.pipeline_mode<synchronous>, transform_indices = @transform_3, window_bounds = array<i64: 32, 32>}, {pipeline_mode = #tpu.pipeline_mode<synchronous>, transform_indices = @transform_4, window_bounds = array<i64: 1, 32>}, {pipeline_mode = #tpu.pipeline_mode<synchronous>, transform_indices = @transform_5, window_bounds = array<i64: 32, 4>}, {pipeline_mode = #tpu.pipeline_mode<synchronous>, transform_indices = @transform_6, window_bounds = array<i64: 1, 4>}, {transform_indices = @transform_7, window_bounds = array<i64: 16, 4>}]} {
    %c0 = arith.constant 0 : index
    %c0_0 = arith.constant 0 : index
    %0 = vector.load %arg1[%c0, %c0_0] : memref<16x16xf32, #tpu.memory_space<vmem>>, vector<16x16xf32>
    %1 = arith.truncf %0 : vector<16x16xf32> to vector<16x16xbf16>
    %c0_1 = arith.constant 0 : index
    %c0_2 = arith.constant 0 : index
    %2 = vector.load %arg2[%c0_1, %c0_2] : memref<16x32xbf16, #tpu.memory_space<vmem>>, vector<16x32xbf16>
    %c0_3 = arith.constant 0 : index
    %c0_4 = arith.constant 0 : index
    %3 = vector.load %arg3[%c0_3, %c0_4] : memref<1x32xf32, #tpu.memory_space<vmem>>, vector<1x32xf32>
    %cst = arith.constant dense<0.000000e+00> : vector<16x32xf32>
    %4 = tpu.matmul %1, %2, %cst {dimension_numbers = #tpu.dot_dimension_numbers<[1], [0], [0], [1], [0, 0, 1, 1], [], []>} : vector<16x16xbf16>, vector<16x32xbf16>, vector<16x32xf32> -> vector<16x32xf32>
    %5 = vector.broadcast %3 : vector<1x32xf32> to vector<16x32xf32>
    %6 = arith.addf %4, %5 : vector<16x32xf32>
    %cst_5 = arith.constant 0.000000e+00 : f32
    %7 = vector.broadcast %cst_5 : f32 to vector<16x32xf32>
    %8 = arith.maximumf %6, %7 : vector<16x32xf32>
    %9 = arith.truncf %8 : vector<16x32xf32> to vector<16x32xbf16>
    %c0_6 = arith.constant 0 : index
    %c0_7 = arith.constant 0 : index
    %10 = vector.load %arg4[%c0_6, %c0_7] : memref<32x32xbf16, #tpu.memory_space<vmem>>, vector<32x32xbf16>
    %c0_8 = arith.constant 0 : index
    %c0_9 = arith.constant 0 : index
    %11 = vector.load %arg5[%c0_8, %c0_9] : memref<1x32xf32, #tpu.memory_space<vmem>>, vector<1x32xf32>
    %cst_10 = arith.constant dense<0.000000e+00> : vector<16x32xf32>
    %12 = tpu.matmul %9, %10, %cst_10 {dimension_numbers = #tpu.dot_dimension_numbers<[1], [0], [0], [1], [0, 0, 1, 1], [], []>} : vector<16x32xbf16>, vector<32x32xbf16>, vector<16x32xf32> -> vector<16x32xf32>
    %13 = vector.broadcast %11 : vector<1x32xf32> to vector<16x32xf32>
    %14 = arith.addf %12, %13 : vector<16x32xf32>
    %cst_11 = arith.constant 0.000000e+00 : f32
    %15 = vector.broadcast %cst_11 : f32 to vector<16x32xf32>
    %16 = arith.maximumf %14, %15 : vector<16x32xf32>
    %17 = arith.truncf %16 : vector<16x32xf32> to vector<16x32xbf16>
    %c0_12 = arith.constant 0 : index
    %c0_13 = arith.constant 0 : index
    %18 = vector.load %arg6[%c0_12, %c0_13] : memref<32x4xbf16, #tpu.memory_space<vmem>>, vector<32x4xbf16>
    %c0_14 = arith.constant 0 : index
    %c0_15 = arith.constant 0 : index
    %19 = vector.load %arg7[%c0_14, %c0_15] : memref<1x4xf32, #tpu.memory_space<vmem>>, vector<1x4xf32>
    %cst_16 = arith.constant dense<0.000000e+00> : vector<16x4xf32>
    %20 = tpu.matmul %17, %18, %cst_16 {dimension_numbers = #tpu.dot_dimension_numbers<[1], [0], [0], [1], [0, 0, 1, 1], [], []>} : vector<16x32xbf16>, vector<32x4xbf16>, vector<16x4xf32> -> vector<16x4xf32>
    %21 = vector.broadcast %19 : vector<1x4xf32> to vector<16x4xf32>
    %22 = arith.addf %20, %21 : vector<16x4xf32>
    %23 = arith.negf %22 : vector<16x4xf32>
    %24 = math.exp %23 : vector<16x4xf32>
    %cst_17 = arith.constant 1.000000e+00 : f32
    %25 = vector.broadcast %cst_17 : f32 to vector<16x4xf32>
    %26 = arith.addf %25, %24 : vector<16x4xf32>
    %27 = arith.divf %25, %26 : vector<16x4xf32>
    %c0_18 = arith.constant 0 : index
    %c0_19 = arith.constant 0 : index
    %28 = vector.load %arg8[%c0_18, %c0_19] : memref<16x4xf32, #tpu.memory_space<vmem>>, vector<16x4xf32>
    tpu.vector_store %arg8[%c0_18, %c0_19], %27 {strides = array<i32>} : memref<16x4xf32, #tpu.memory_space<vmem>>, vector<16x4xf32>,
    return
  }
  func.func @transform_0(%arg0: i32) -> (i32, i32) {
    %c0_i32 = arith.constant 0 : i32
    %c0_i32_0 = arith.constant 0 : i32
    return %arg0, %c0_i32 : i32, i32
  }
  func.func @transform_1(%arg0: i32) -> (i32, i32) {
    %c0_i32 = arith.constant 0 : i32
    %c0_i32_0 = arith.constant 0 : i32
    %c0_i32_1 = arith.constant 0 : i32
    return %c0_i32, %c0_i32_0 : i32, i32
  }
  func.func @transform_2(%arg0: i32) -> (i32, i32) {
    %c0_i32 = arith.constant 0 : i32
    %c0_i32_0 = arith.constant 0 : i32
    %c0_i32_1 = arith.constant 0 : i32
    return %c0_i32, %c0_i32_0 : i32, i32
  }
  func.func @transform_3(%arg0: i32) -> (i32, i32) {
    %c0_i32 = arith.constant 0 : i32
    %c0_i32_0 = arith.constant 0 : i32
    %c0_i32_1 = arith.constant 0 : i32
    return %c0_i32, %c0_i32_0 : i32, i32
  }
  func.func @transform_4(%arg0: i32) -> (i32, i32) {
    %c0_i32 = arith.constant 0 : i32
    %c0_i32_0 = arith.constant 0 : i32
    %c0_i32_1 = arith.constant 0 : i32
    return %c0_i32, %c0_i32_0 : i32, i32
  }
  func.func @transform_5(%arg0: i32) -> (i32, i32) {
    %c0_i32 = arith.constant 0 : i32
    %c0_i32_0 = arith.constant 0 : i32
    %c0_i32_1 = arith.constant 0 : i32
    return %c0_i32, %c0_i32_0 : i32, i32
  }
  func.func @transform_6(%arg0: i32) -> (i32, i32) {
    %c0_i32 = arith.constant 0 : i32
    %c0_i32_0 = arith.constant 0 : i32
    %c0_i32_1 = arith.constant 0 : i32
    return %c0_i32, %c0_i32_0 : i32, i32
  }
  func.func @transform_7(%arg0: i32) -> (i32, i32) {
    %c0_i32 = arith.constant 0 : i32
    %c0_i32_0 = arith.constant 0 : i32
    return %arg0, %c0_i32 : i32, i32
  }
}

</mosaic_0001>

<llo_original>
// kernel: tpu_custom_call.1
$region0: #{tpu_custom_call.1}
  #allocation0 [shape = 'u32[]', space=smem, size = 0x4, offset = 0x4, fixed_abs, tag = 'smem constant byte address 0x4 - core index']
  #allocation1 [shape = 'u32[144,128]{1,0:T(1,128)}', space=vmem, size = 0x12000, scoped, tag = 'internal scratch']
  %s0 = inlined_call_operand.vmem [shape: f32[8,16], index: 0, kind: input, shape index: {}]
  %s1 = inlined_call_operand.hbm [shape: bf16[16,32], index: 1, kind: input, shape index: {}]
  %s2 = inlined_call_operand.vmem [shape: f32[1,32], index: 2, kind: input, shape index: {}]
  %s3 = inlined_call_operand.vmem [shape: bf16[32,32], index: 3, kind: input, shape index: {}]
  %s4 = inlined_call_operand.vmem [shape: f32[1,32], index: 4, kind: input, shape index: {}]
  %s5 = inlined_call_operand.vmem [shape: bf16[32,4], index: 5, kind: input, shape index: {}]
  %s6 = inlined_call_operand.vmem [shape: f32[1,4], index: 6, kind: input, shape index: {}]
  %s7 = inlined_call_operand.vmem [shape: f32[8,4], index: 7, kind: output, shape index: {}]
  %s8 = sld [smem:[#allocation0]]
  $region76: #{tpu_custom_call.1} parent=0
    _
  %s10 = ssub.s32 1, %s8
  %s11 = scalar_select 0, %s10, %s8
  $region1: #{tpu_custom_call.1} parent=0
    #allocation2 [shape = 'u8[4096]{0}', space=vmem, size = 0x1000, scoped, tag = 'input window, operand 1, single buffered']
    #allocation3 [shape = 's32[1]{0}', space=sflag, size = 0x4, scoped, tag = 'scoped memory for tpu_custom_call.1']
    #allocation4 [shape = 'u8[8192]{0}', space=vmem, size = 0x2000, scoped, tag = 'output window, operand 0, single buffered']
    %12 = vsyncpa [#allocation3], 0
    // Predicated region
    $region2: #{tpu_custom_call.1} parent=1 // pred_check
      _
    $region3: #{tpu_custom_call.1} parent=1 // pred_check_branch
      %14 = sbr.rel (0) target = $region5
    $region4: #{tpu_custom_call.1} parent=1 // pred_region
      _
    $region5: #{tpu_custom_call.1} parent=1 // pred_fallthru
      _
    // Predicated region
    $region6: #{tpu_custom_call.1} parent=1 // pred_check
      _
    $region7: #{tpu_custom_call.1} parent=1 // pred_check_branch
      %16 = sbr.rel (0) target = $region9
    $region8: #{tpu_custom_call.1} parent=1 // pred_region
      %s18 = ssub.s32 128, 128
      %19 = vsyncadd [#allocation3], %s18
      %s20 = sshll.u32 [#allocation2], 4
      %s21 = int_to_ptr.vmem [resolvable:$true] %s20
      %26 = dma.hbm_to_vmem [thread:$0]  %s1, 128, %s21, [#allocation3], 64, 64, 4
    $region9: #{tpu_custom_call.1} parent=1 // pred_fallthru
      _
    // Predicated region
    $region10: #{tpu_custom_call.1} parent=1 // pred_check
      _
    $region11: #{tpu_custom_call.1} parent=1 // pred_check_branch
      %28 = sbr.rel (0) target = $region13
    $region12: #{tpu_custom_call.1} parent=1 // pred_region
      _
    $region13: #{tpu_custom_call.1} parent=1 // pred_fallthru
      _
    // Predicated region
    $region14: #{tpu_custom_call.1} parent=1 // pred_check
      _
    $region15: #{tpu_custom_call.1} parent=1 // pred_check_branch
      %30 = sbr.rel (0) target = $region17
    $region16: #{tpu_custom_call.1} parent=1 // pred_region
      _
    $region17: #{tpu_custom_call.1} parent=1 // pred_fallthru
      _
    // Predicated region
    $region18: #{tpu_custom_call.1} parent=1 // pred_check
      _
    $region19: #{tpu_custom_call.1} parent=1 // pred_check_branch
      %32 = sbr.rel (0) target = $region21
    $region20: #{tpu_custom_call.1} parent=1 // pred_region
      _
    $region21: #{tpu_custom_call.1} parent=1 // pred_fallthru
      _
    // Predicated region
    $region22: #{tpu_custom_call.1} parent=1 // pred_check
      _
    $region23: #{tpu_custom_call.1} parent=1 // pred_check_branch
      %34 = sbr.rel (0) target = $region25
    $region24: #{tpu_custom_call.1} parent=1 // pred_region
      _
    $region25: #{tpu_custom_call.1} parent=1 // pred_fallthru
      _
    // Predicated region
    $region26: #{tpu_custom_call.1} parent=1 // pred_check
      _
    $region27: #{tpu_custom_call.1} parent=1 // pred_check_branch
      %36 = sbr.rel (0) target = $region29
    $region28: #{tpu_custom_call.1} parent=1 // pred_region
      _
    $region29: #{tpu_custom_call.1} parent=1 // pred_fallthru
      _
    // Predicated region
    $region30: #{tpu_custom_call.1} parent=1 // pred_check
      _
    $region31: #{tpu_custom_call.1} parent=1 // pred_check_branch
      %38 = sbr.rel (0) target = $region33
    $region32: #{tpu_custom_call.1} parent=1 // pred_region
      %39 = dma.done [#allocation3], 128
    $region33: #{tpu_custom_call.1} parent=1 // pred_fallthru
      _
    %v41 = vld [vmem:[%s0] sm:$0xff]
    %v42 = vld [vmem:[%s0 + $0x8] sm:$0xff]
    %v43 = vpack.c.bf16 %v42, %v41
    %v44 = vld [vmem:[#allocation2] sm:$0xf]
    %v45 = vld [vmem:[#allocation2 + $0x4] sm:$0xf]
    %v46 = vld [vmem:[%s2] sm:$0x1]
    %v48 = vlaneseq
    %v49 = vshrl.u32 %v48, 7
    %v50 = vsub.s32 0, %v49
    %v51 = vrot.slane %v46, %v50
    %v55 = vunpack.c.l.b16 %v44
    %v56 = vunpack.c.l.b16 %v45
    %v57 = vpack.c.b16 %v56, %v55
    %vm59 = vcmask 130048
    %v61 = vsel %vm59, %v43, 0
    %63 = vmatprep.subr.bf16.mxu0 0
    %64 = vmatpush1.bf16.msra.mxu0 %v57
    %65 = vmatprep.subr.bf16.mxu0 0
    %66 = vmatpush1.bf16.msra.mxu0 0
    %67 = vmatprep.subr.bf16.mxu0 0
    %68 = vmatpush1.bf16.msra.mxu0 0
    %69 = vmatprep.subr.bf16.mxu0 0
    %70 = vmatpush1.bf16.msra.mxu0 0
    %71 = vmatprep.subr.bf16.mxu0 0
    %72 = vmatpush1.bf16.msra.mxu0 0
    %73 = vmatprep.subr.bf16.mxu0 0
    %74 = vmatpush1.bf16.msra.mxu0 0
    %75 = vmatprep.subr.bf16.mxu0 0
    %76 = vmatpush1.bf16.msra.mxu0 0
    %77 = vmatprep.subr.bf16.mxu0 0
    %78 = vmatpush1.bf16.msra.mxu0 0
    %79 = vmatprep.subr.bf16.mxu0 0
    %80 = vmatpush1.bf16.msra.mxu0 0
    %81 = vmatprep.subr.bf16.mxu0 0
    %82 = vmatpush1.bf16.msra.mxu0 0
    %83 = vmatprep.subr.bf16.mxu0 0
    %84 = vmatpush1.bf16.msra.mxu0 0
    %85 = vmatprep.subr.bf16.mxu0 0
    %86 = vmatpush1.bf16.msra.mxu0 0
    %87 = vmatprep.subr.bf16.mxu0 0
    %88 = vmatpush1.bf16.msra.mxu0 0
    %89 = vmatprep.subr.bf16.mxu0 0
    %90 = vmatpush1.bf16.msra.mxu0 0
    %91 = vmatprep.subr.bf16.mxu0 0
    %92 = vmatpush1.bf16.msra.mxu0 0
    %93 = vmatprep.subr.bf16.mxu0 0
    %94 = vmatpush1.bf16.msra.mxu0 0
    %95 = vmatprep.mubr.bf16.mxu0 0
    %96 = vmatmul.mubr.bf16.gmra.mrb[0].mxu0 %v61
    %v97 = vpop.f32.mrb[0].mxu0
    %v98 = vadd.f32 %v51, %v97
    %v99 = vpop.f32.mrb[0].mxu0
    %v100 = vpop.f32.mrb[0].mxu0
    %v101 = vadd.f32 %v51, %v100
    %v102 = vpop.f32.mrb[0].mxu0
    %103 = vdwg.mxu0
    %v104 = vmax.f32 %v98, 0.0
    %v105 = vmax.f32 %v101, 0.0
    %v106 = vpack.c.bf16 %v105, %v104
    %v107 = vld [vmem:[%s3] sm:$0xf]
    %v108 = vld [vmem:[%s3 + $0x4] sm:$0xf]
    %v109 = vld [vmem:[%s3 + $0x8] sm:$0xf]
    %v110 = vld [vmem:[%s3 + $0xc] sm:$0xf]
    %v111 = vld [vmem:[%s4] sm:$0x1]
    %v113 = vlaneseq
    %v114 = vshrl.u32 %v113, 7
    %v115 = vsub.s32 0, %v114
    %v116 = vrot.slane %v111, %v115
    %v122 = vunpack.c.l.b16 %v107
    %v123 = vunpack.c.l.b16 %v108
    %v124 = vunpack.c.l.b16 %v109
    %v125 = vunpack.c.l.b16 %v110
    %v126 = vpack.c.b16 %v123, %v122
    %v127 = vpack.c.b16 %v125, %v124
    %vm130 = vcmask 261120
    %v132 = vsel %vm130, %v106, 0
    %134 = vmatprep.subr.bf16.mxu0 0
    %135 = vmatpush1.bf16.msra.mxu0 %v126
    %136 = vmatprep.subr.bf16.mxu0 0
    %137 = vmatpush1.bf16.msra.mxu0 %v127
    %138 = vmatprep.subr.bf16.mxu0 0
    %139 = vmatpush1.bf16.msra.mxu0 0
    %140 = vmatprep.subr.bf16.mxu0 0
    %141 = vmatpush1.bf16.msra.mxu0 0
    %142 = vmatprep.subr.bf16.mxu0 0
    %143 = vmatpush1.bf16.msra.mxu0 0
    %144 = vmatprep.subr.bf16.mxu0 0
    %145 = vmatpush1.bf16.msra.mxu0 0
    %146 = vmatprep.subr.bf16.mxu0 0
    %147 = vmatpush1.bf16.msra.mxu0 0
    %148 = vmatprep.subr.bf16.mxu0 0
    %149 = vmatpush1.bf16.msra.mxu0 0
    %150 = vmatprep.subr.bf16.mxu0 0
    %151 = vmatpush1.bf16.msra.mxu0 0
    %152 = vmatprep.subr.bf16.mxu0 0
    %153 = vmatpush1.bf16.msra.mxu0 0
    %154 = vmatprep.subr.bf16.mxu0 0
    %155 = vmatpush1.bf16.msra.mxu0 0
    %156 = vmatprep.subr.bf16.mxu0 0
    %157 = vmatpush1.bf16.msra.mxu0 0
    %158 = vmatprep.subr.bf16.mxu0 0
    %159 = vmatpush1.bf16.msra.mxu0 0
    %160 = vmatprep.subr.bf16.mxu0 0
    %161 = vmatpush1.bf16.msra.mxu0 0
    %162 = vmatprep.subr.bf16.mxu0 0
    %163 = vmatpush1.bf16.msra.mxu0 0
    %164 = vmatprep.subr.bf16.mxu0 0
    %165 = vmatpush1.bf16.msra.mxu0 0
    %166 = vmatprep.mubr.bf16.mxu0 0
    %167 = vmatmul.mubr.bf16.gmra.mrb[0].mxu0 %v132
    %v168 = vpop.f32.mrb[0].mxu0
    %v169 = vadd.f32 %v116, %v168
    %v170 = vpop.f32.mrb[0].mxu0
    %v171 = vpop.f32.mrb[0].mxu0
    %v172 = vadd.f32 %v116, %v171
    %v173 = vpop.f32.mrb[0].mxu0
    %174 = vdwg.mxu0
    %v175 = vmax.f32 %v169, 0.0
    %v176 = vmax.f32 %v172, 0.0
    %v177 = vpack.c.bf16 %v176, %v175
    %v178 = vld [vmem:[%s5] sm:$0xf]
    %v179 = vld [vmem:[%s5 + $0x4] sm:$0xf]
    %v180 = vld [vmem:[%s5 + $0x8] sm:$0xf]
    %v181 = vld [vmem:[%s5 + $0xc] sm:$0xf]
    %v182 = vld [vmem:[%s6] sm:$0x1]
    %v184 = vlaneseq
    %v185 = vshrl.u32 %v184, 7
    %v186 = vsub.s32 0, %v185
    %v187 = vrot.slane %v182, %v186
    %v193 = vunpack.c.l.b16 %v178
    %v194 = vunpack.c.l.b16 %v179
    %v195 = vunpack.c.l.b16 %v180
    %v196 = vunpack.c.l.b16 %v181
    %v197 = vpack.c.b16 %v194, %v193
    %v198 = vpack.c.b16 %v196, %v195
    %v202 = vsel %vm130, %v177, 0
    %204 = vmatprep.subr.bf16.mxu0 0
    %205 = vmatpush1.bf16.msra.mxu0 %v197
    %206 = vmatprep.subr.bf16.mxu0 0
    %207 = vmatpush1.bf16.msra.mxu0 %v198
    %208 = vmatprep.subr.bf16.mxu0 0
    %209 = vmatpush1.bf16.msra.mxu0 0
    %210 = vmatprep.subr.bf16.mxu0 0
    %211 = vmatpush1.bf16.msra.mxu0 0
    %212 = vmatprep.subr.bf16.mxu0 0
    %213 = vmatpush1.bf16.msra.mxu0 0
    %214 = vmatprep.subr.bf16.mxu0 0
    %215 = vmatpush1.bf16.msra.mxu0 0
    %216 = vmatprep.subr.bf16.mxu0 0
    %217 = vmatpush1.bf16.msra.mxu0 0
    %218 = vmatprep.subr.bf16.mxu0 0
    %219 = vmatpush1.bf16.msra.mxu0 0
    %220 = vmatprep.subr.bf16.mxu0 0
    %221 = vmatpush1.bf16.msra.mxu0 0
    %222 = vmatprep.subr.bf16.mxu0 0
    %223 = vmatpush1.bf16.msra.mxu0 0
    %224 = vmatprep.subr.bf16.mxu0 0
    %225 = vmatpush1.bf16.msra.mxu0 0
    %226 = vmatprep.subr.bf16.mxu0 0
    %227 = vmatpush1.bf16.msra.mxu0 0
    %228 = vmatprep.subr.bf16.mxu0 0
    %229 = vmatpush1.bf16.msra.mxu0 0
    %230 = vmatprep.subr.bf16.mxu0 0
    %231 = vmatpush1.bf16.msra.mxu0 0
    %232 = vmatprep.subr.bf16.mxu0 0
    %233 = vmatpush1.bf16.msra.mxu0 0
    %234 = vmatprep.subr.bf16.mxu0 0
    %235 = vmatpush1.bf16.msra.mxu0 0
    %236 = vmatprep.mubr.bf16.mxu0 0
    %237 = vmatmul.mubr.bf16.gmra.mrb[0].mxu0 %v202
    %v238 = vpop.f32.mrb[0].mxu0
    %v239 = vadd.f32 %v187, %v238
    %v240 = vpop.f32.mrb[0].mxu0
    %v241 = vpop.f32.mrb[0].mxu0
    %v242 = vadd.f32 %v187, %v241
    %v243 = vpop.f32.mrb[0].mxu0
    %244 = vdwg.mxu0
    %v245 = vxor.u32 %v239, 2147483648
    %v246 = vxor.u32 %v242, 2147483648
    %v247 = vmul.f32 %v245, 1.442695
    %v248 = vpow.pop %v247
    %v249 = vmul.f32 %v246, 1.442695
    %v250 = vpow.pop %v249
    %v251 = vadd.f32 %v248, 1.0
    %v252 = vadd.f32 %v250, 1.0
    %v253 = vrcp.pop %v251
    %v254 = vmul.f32 1.0, %v253
    %v255 = vrcp.pop %v252
    %v256 = vmul.f32 1.0, %v255
    %vm257 = vcmask 31744
    %258 = vst.msk [vmem:[#allocation4] sm:$0xff] %vm257, %v254
    %259 = vst.msk [vmem:[#allocation4 + $0x8] sm:$0xff] %vm257, %v256
    // Predicated region
    $region34: #{tpu_custom_call.1} parent=1 // pred_check
      _
    $region35: #{tpu_custom_call.1} parent=1 // pred_check_branch
      %261 = sbr.rel (0) target = $region37
    $region36: #{tpu_custom_call.1} parent=1 // pred_region
      // Predicated region
      $region38: #{tpu_custom_call.1} parent=36 // pred_check
        _
      $region39: #{tpu_custom_call.1} parent=36 // pred_check_branch
        %263 = sbr.rel (0) target = $region41
      $region40: #{tpu_custom_call.1} parent=36 // pred_region
        // Predicated region
        $region42: #{tpu_custom_call.1} parent=40 // pred_check
          _
        $region43: #{tpu_custom_call.1} parent=40 // pred_check_branch
          %265 = sbr.rel (0) target = $region45
        $region44: #{tpu_custom_call.1} parent=40 // pred_region
          // Predicated region
          $region57: #{tpu_custom_call.1} parent=44 // pred_check
            _
          $region58: #{tpu_custom_call.1} parent=44 // pred_check_branch
            %280 = sbr.rel (0) target = $region60
          $region59: #{tpu_custom_call.1} parent=44 // pred_region
            loop: start=0, step=1, limit=1
            $region61: #{tpu_custom_call.1} parent=59 // loop_pre_header
              _
            $region62: #{tpu_custom_call.1} parent=59 // loop_header
              %s282 = sphi 0, %s286
              %p283 = scmp.ge.s32.totalorder %s282, 1
              %s287 = sphi [#allocation4], [#allocation4]
              %s288 = sphi %s7, %s7
            $region63: #{tpu_custom_call.1} parent=59 // loop_header_branch
              %285 = sbr.rel (%p283) target = $region67
            $region64: #{tpu_custom_call.1} parent=59 // loop_body
              %v289 = vld [vmem:[%s287] sm:$0xff]
              %290 = vst [vmem:[%s288] sm:$0xff] %v289
            $region65: #{tpu_custom_call.1} parent=59 // loop_footer
              %s286 = sadd.s32 1, %s282
            $region66: #{tpu_custom_call.1} parent=59 // loop_footer_branch
              %281 = sbr.rel target = $region62
            $region67: #{tpu_custom_call.1} parent=59 // loop_exit
              _
          $region60: #{tpu_custom_call.1} parent=44 // pred_fallthru
            _
          // Predicated region
          $region68: #{tpu_custom_call.1} parent=44 // pred_check
            _
          $region69: #{tpu_custom_call.1} parent=44 // pred_check_branch
            %292 = sbr.rel target = $region71
          $region70: #{tpu_custom_call.1} parent=44 // pred_region
            _
          $region71: #{tpu_custom_call.1} parent=44 // pred_fallthru
            _
        $region45: #{tpu_custom_call.1} parent=40 // pred_fallthru
          _
        // Predicated region
        $region46: #{tpu_custom_call.1} parent=40 // pred_check
          _
        $region47: #{tpu_custom_call.1} parent=40 // pred_check_branch
          %267 = sbr.rel target = $region49
        $region48: #{tpu_custom_call.1} parent=40 // pred_region
          loop: start=0, step=1, limit=1
          $region50: #{tpu_custom_call.1} parent=48 // loop_pre_header
            _
          $region51: #{tpu_custom_call.1} parent=48 // loop_header
            %s270 = sphi 0, %s274
            %p271 = scmp.ge.s32.totalorder %s270, 1
            %s275 = sphi [#allocation4], [#allocation4]
            %s276 = sphi %s7, %s7
          $region52: #{tpu_custom_call.1} parent=48 // loop_header_branch
            %273 = sbr.rel (%p271) target = $region56
          $region53: #{tpu_custom_call.1} parent=48 // loop_body
            %v277 = vld [vmem:[%s275] sm:$0xff]
            %278 = vst [vmem:[%s276] sm:$0xff] %v277
          $region54: #{tpu_custom_call.1} parent=48 // loop_footer
            %s274 = sadd.s32 1, %s270
          $region55: #{tpu_custom_call.1} parent=48 // loop_footer_branch
            %269 = sbr.rel target = $region51
          $region56: #{tpu_custom_call.1} parent=48 // loop_exit
            _
        $region49: #{tpu_custom_call.1} parent=40 // pred_fallthru
          _
      $region41: #{tpu_custom_call.1} parent=36 // pred_fallthru
        _
      %293 = vnop
    $region37: #{tpu_custom_call.1} parent=1 // pred_fallthru
      _
    // Predicated region
    $region72: #{tpu_custom_call.1} parent=1 // pred_check
      _
    $region73: #{tpu_custom_call.1} parent=1 // pred_check_branch
      %295 = sbr.rel (0) target = $region75
    $region74: #{tpu_custom_call.1} parent=1 // pred_region
      _
    $region75: #{tpu_custom_call.1} parent=1 // pred_fallthru
      _
    %296 = vsyncpa [#allocation3], 1

</llo_original>
